<compile_context>
chip_gen: v6e
topology: v6e:2x2x1
jax: 0.10.0
libtpu: 0.0.40
codegen_flags: <defaults>
</compile_context>

<pallas_src>
import functools

import numpy as np
import jax
import jax.numpy as jnp
from jax.experimental import pallas as pl
from jax.experimental.pallas import tpu as pltpu

EPS = 1e-5


def double_conv_kernel(x_ref, w1_ref, g1_ref, b1_ref, w2_ref, g2_ref, b2_ref,
                       out_ref, *, img_h, img_w, cout):
    nh = x_ref.shape[0]
    inv_m = 1.0 / float(nh * img_w)            # 1 / (N*H*W) samples per channel

    # --- hoisted row-validity masks (shared by both convs) ----------------------------
    row = jax.lax.broadcasted_iota(jnp.int32, (nh, 1), 0)
    r_in_img = row % img_h
    not_top = r_in_img >= 1                    # row r-1 exists inside the same image
    not_bot = r_in_img <= img_h - 2            # row r+1 exists inside the same image

    def shift_up(x):                           # y[r] = x[r-1], zero at image top
        z = jnp.zeros((1, x.shape[1]), x.dtype)
        s = jnp.concatenate([z, x[:-1, :]], axis=0)
        return jnp.where(not_top, s, jnp.zeros_like(s))

    def shift_dn(x):                           # y[r] = x[r+1], zero at image bottom
        z = jnp.zeros((1, x.shape[1]), x.dtype)
        s = jnp.concatenate([x[1:, :], z], axis=0)
        return jnp.where(not_bot, s, jnp.zeros_like(s))

    def conv3x3(x_bf, w_ref):
        # Single fused matmul: lane-concat of the three ky-shifted copies against the
        # block-banded slab.  bf16 operands, f32 accumulation on the MXU.
        xc = jnp.concatenate([shift_up(x_bf), x_bf, shift_dn(x_bf)], axis=1)
        return jnp.dot(xc, w_ref[...], preferred_element_type=jnp.float32)

    def bn_relu(y, g_ref, b_ref):
        # y: (N*H, W*Cout) f32.  Single-pass batch stats (sum + sum-of-squares); the
        # cross-W reduce + broadcast of per-channel totals is a roll+add butterfly on
        # the lane axis (XLU), since lane = w_pos*Cout + channel.
        tot = jnp.concatenate(
            [jnp.sum(y, axis=0, keepdims=True),
             jnp.sum(y * y, axis=0, keepdims=True)], axis=0)             # (2, L) f32
        if img_w & (img_w - 1) == 0:           # power-of-two W: log2(W) butterfly
            sh = cout
            for _ in range(img_w.bit_length() - 1):
                tot = tot + pltpu.roll(tot, shift=sh, axis=1)
                sh *= 2
        else:                                  # general W: linear cyclic reduce
            acc = tot
            for k in range(1, img_w):
                acc = acc + pltpu.roll(tot, shift=k * cout, axis=1)
            tot = acc
        mean = tot[0:1] * inv_m
        var = jnp.maximum(tot[1:2] * inv_m - mean * mean, 0.0)           # biased var >= 0
        scale = g_ref[...] * jax.lax.rsqrt(var + EPS)                    # (1, L) f32
        shift = b_ref[...] - mean * scale
        return jnp.maximum(y * scale + shift, 0.0)

    y1 = bn_relu(conv3x3(x_ref[...], w1_ref), g1_ref, b1_ref)            # (N*H, W*Cout) f32
    y2 = bn_relu(conv3x3(y1.astype(jnp.bfloat16), w2_ref), g2_ref, b2_ref)
    out_ref[...] = y2.astype(out_ref.dtype)


def _fold_conv_weights(w, img_w):
    """(3,3,Cin,Cout) HWIO -> (3*W*Cin, W*Cout) bf16 block-banded slab.

    Slab[ky*W*Cin + s*Cin + ci, j*Cout + co] = w[ky, kx, ci, co] with s = j + kx - 1;
    entries with s outside [0, W) are absent (== the conv's left/right zero padding).
    Row-block order [ky=0, ky=1, ky=2] matches the kernel's [shift_up, x, shift_dn] concat.
    """
    _, _, cin, cout = w.shape
    sel = np.zeros((3, img_w, img_w), np.float32)
    for kx in range(3):
        for j in range(img_w):
            s = j + kx - 1
            if 0 <= s < img_w:
                sel[kx, s, j] = 1.0
    folded = jnp.einsum('yxic,xsj->ysijc', w.astype(jnp.float32), jnp.asarray(sel))
    return folded.reshape(3 * img_w * cin, img_w * cout).astype(jnp.bfloat16)


def double_conv_pallas(x_nchw, w1, g1, b1, w2, g2, b2):
    n, cin, h, w = x_nchw.shape
    cout = w1.shape[-1]
    l_in, l_out = w * cin, w * cout

    # NCHW -> lane-dense (N*H, W*Cin), channels innermost on the lane axis; bf16 operand.
    x2d = (jnp.transpose(x_nchw, (0, 2, 3, 1))
           .reshape(n * h, l_in).astype(jnp.bfloat16))

    w1b = _fold_conv_weights(w1, w)           # (3*W*Cin,  W*Cout) bf16
    w2b = _fold_conv_weights(w2, w)           # (3*W*Cout, W*Cout) bf16

    # BN affine params tiled to the (1, W*Cout) lane layout, kept f32.
    g1t = jnp.tile(g1.reshape(1, cout).astype(jnp.float32), (1, w))
    b1t = jnp.tile(b1.reshape(1, cout).astype(jnp.float32), (1, w))
    g2t = jnp.tile(g2.reshape(1, cout).astype(jnp.float32), (1, w))
    b2t = jnp.tile(b2.reshape(1, cout).astype(jnp.float32), (1, w))

    kernel = functools.partial(double_conv_kernel, img_h=h, img_w=w, cout=cout)

    # TODO(synk): for production U-Net shapes, tile over N*H row-bands (grid axis marked
    # "parallel" so v7x's 2 TCs split it) with +-1-row halos and a two-pass global
    # BatchNorm reduction, and drop the W-folded slab once Cin/Cout are MXU-sized.
    # At this toy size the whole problem is VMEM-resident, so one grid step is optimal.
    grid_spec = pltpu.PrefetchScalarGridSpec(
        num_scalar_prefetch=0,
        grid=(1,),
        in_specs=[
            pl.BlockSpec(x2d.shape, lambda i: (0, 0)),
            pl.BlockSpec(w1b.shape, lambda i: (0, 0)),
            pl.BlockSpec(g1t.shape, lambda i: (0, 0)),
            pl.BlockSpec(b1t.shape, lambda i: (0, 0)),
            pl.BlockSpec(w2b.shape, lambda i: (0, 0)),
            pl.BlockSpec(g2t.shape, lambda i: (0, 0)),
            pl.BlockSpec(b2t.shape, lambda i: (0, 0)),
        ],
        out_specs=pl.BlockSpec((n * h, l_out), lambda i: (0, 0)),
    )

    out2d = pl.pallas_call(
        kernel,
        out_shape=jax.ShapeDtypeStruct((n * h, l_out), jnp.float32),
        grid_spec=grid_spec,
        compiler_params=pltpu.CompilerParams(
            dimension_semantics=("arbitrary",)),
    )(x2d, w1b, g1t, b1t, w2b, g2t, b2t)

    # (N*H, W*Cout) -> NCHW (wrapper-side relayout only).
    return jnp.transpose(out2d.reshape(n, h, w, cout), (0, 3, 1, 2))


def double_conv_ref(x_nchw, w1, g1, b1, w2, g2, b2):
    # Pure-JAX f32 reference matching the PyTorch module's training-mode forward.
    x = jnp.transpose(x_nchw, (0, 2, 3, 1)).astype(jnp.float32)

    def conv(x, w):
        return jax.lax.conv_general_dilated(
            x, w, window_strides=(1, 1), padding=((1, 1), (1, 1)),
            dimension_numbers=('NHWC', 'HWIO', 'NHWC'))

    def bn_relu(y, g, b):
        m = jnp.mean(y, axis=(0, 1, 2), keepdims=True)
        v = jnp.mean((y - m) ** 2, axis=(0, 1, 2), keepdims=True)
        yh = (y - m) * jax.lax.rsqrt(v + EPS)
        return jnp.maximum(yh * g.reshape(1, 1, 1, -1) + b.reshape(1, 1, 1, -1), 0.0)

    y = bn_relu(conv(x, w1), g1, b1)
    y = bn_relu(conv(y, w2), g2, b2)
    return jnp.transpose(y, (0, 3, 1, 2))


if __name__ == "__main__":
    N, Cin, Cout, H, W = 2, 4, 8, 16, 16

    key = jax.random.PRNGKey(0)
    kx, kw1, kw2, kg1, kb1, kg2, kb2 = jax.random.split(key, 7)

    x = jax.random.normal(kx, (N, Cin, H, W), jnp.float32)               # NCHW input
    # Conv weights in HWIO layout (3,3,Cin,Cout) — bias=False as in the module.
    w1 = jax.random.normal(kw1, (3, 3, Cin, Cout), jnp.float32) * 0.1
    w2 = jax.random.normal(kw2, (3, 3, Cout, Cout), jnp.float32) * 0.1
    # BatchNorm affine params.
    g1 = 1.0 + 0.1 * jax.random.normal(kg1, (1, Cout), jnp.float32)
    b1 = 0.1 * jax.random.normal(kb1, (1, Cout), jnp.float32)
    g2 = 1.0 + 0.1 * jax.random.normal(kg2, (1, Cout), jnp.float32)
    b2 = 0.1 * jax.random.normal(kb2, (1, Cout), jnp.float32)

    out = double_conv_pallas(x, w1, g1, b1, w2, g2, b2)
    out = jax.block_until_ready(out)

    ref = jax.block_until_ready(double_conv_ref(x, w1, g1, b1, w2, g2, b2))
    assert out.shape == (N, Cout, H, W)
    # Tolerance sized for bf16 MXU operands (f32 accumulation) vs a pure-f32 reference.
    assert jnp.allclose(out, ref, atol=2e-2, rtol=2e-2), "mismatch vs JAX reference"

    print("KERNEL_OK")
</pallas_src>

<mosaic_0001>
module attributes {stable_mosaic.version = 11 : i64} {
  func.func @double_conv_kernel(%arg0: i32, %arg1: memref<32x64xbf16, #tpu.memory_space<vmem>>, %arg2: memref<192x128xbf16, #tpu.memory_space<vmem>>, %arg3: memref<1x128xf32, #tpu.memory_space<vmem>>, %arg4: memref<1x128xf32, #tpu.memory_space<vmem>>, %arg5: memref<384x128xbf16, #tpu.memory_space<vmem>>, %arg6: memref<1x128xf32, #tpu.memory_space<vmem>>, %arg7: memref<1x128xf32, #tpu.memory_space<vmem>>, %arg8: memref<32x128xf32, #tpu.memory_space<vmem>>) attributes {dimension_semantics = [#tpu.dimension_semantics<arbitrary>], iteration_bounds = array<i64: 1>, scalar_prefetch = 0 : i64, scratch_operands = 0 : i64, tpu.core_type = #tpu.core_type<tc>, window_params = [{pipeline_mode = #tpu.pipeline_mode<synchronous>, transform_indices = @transform_0, window_bounds = array<i64: 32, 64>}, {pipeline_mode = #tpu.pipeline_mode<synchronous>, transform_indices = @transform_1, window_bounds = array<i64: 192, 128>}, {pipeline_mode = #tpu.pipeline_mode<synchronous>, transform_indices = @transform_2, window_bounds = array<i64: 1, 128>}, {pipeline_mode = #tpu.pipeline_mode<synchronous>, transform_indices = @transform_3, window_bounds = array<i64: 1, 128>}, {pipeline_mode = #tpu.pipeline_mode<synchronous>, transform_indices = @transform_4, window_bounds = array<i64: 384, 128>}, {pipeline_mode = #tpu.pipeline_mode<synchronous>, transform_indices = @transform_5, window_bounds = array<i64: 1, 128>}, {pipeline_mode = #tpu.pipeline_mode<synchronous>, transform_indices = @transform_6, window_bounds = array<i64: 1, 128>}, {pipeline_mode = #tpu.pipeline_mode<synchronous>, transform_indices = @transform_7, window_bounds = array<i64: 32, 128>}]} {
    %0 = tpu.iota {dimensions = array<i32: 0>} : vector<32x1xi32>
    %c16_i32 = arith.constant 16 : i32
    %c0_i32 = arith.constant 0 : i32
    %1 = arith.cmpi eq, %c16_i32, %c0_i32 : i32
    %c1_i32 = arith.constant 1 : i32
    %2 = arith.select %1, %c1_i32, %c16_i32 : i32
    %3 = vector.broadcast %2 : i32 to vector<32x1xi32>
    %4 = arith.remsi %0, %3 : vector<32x1xi32>
    %c0_i32_0 = arith.constant 0 : i32
    %5 = vector.broadcast %c0_i32_0 : i32 to vector<32x1xi32>
    %6 = arith.cmpi ne, %4, %5 : vector<32x1xi32>
    %c0_i32_1 = arith.constant 0 : i32
    %7 = vector.broadcast %c0_i32_1 : i32 to vector<32x1xi32>
    %8 = arith.cmpi slt, %4, %7 : vector<32x1xi32>
    %c0_i32_2 = arith.constant 0 : i32
    %9 = arith.cmpi slt, %2, %c0_i32_2 : i32
    %10 = vector.broadcast %9 : i1 to vector<32x1xi1>
    %11 = vector.broadcast %10 : vector<32x1xi1> to vector<32x1xi1>
    %12 = arith.xori %8, %11 : vector<32x1xi1>
    %13 = arith.andi %12, %6 : vector<32x1xi1>
    %14 = vector.broadcast %2 : i32 to vector<32x1xi32>
    %15 = arith.addi %4, %14 : vector<32x1xi32>
    %16 = arith.select %13, %15, %4 : vector<32x1xi1>, vector<32x1xi32>
    %c1_i32_3 = arith.constant 1 : i32
    %17 = vector.broadcast %c1_i32_3 : i32 to vector<32x1xi32>
    %18 = arith.cmpi sge, %16, %17 : vector<32x1xi32>
    %c14_i32 = arith.constant 14 : i32
    %19 = vector.broadcast %c14_i32 : i32 to vector<32x1xi32>
    %20 = arith.cmpi sle, %16, %19 : vector<32x1xi32>
    %c0 = arith.constant 0 : index
    %c0_4 = arith.constant 0 : index
    %21 = vector.load %arg1[%c0, %c0_4] : memref<32x64xbf16, #tpu.memory_space<vmem>>, vector<32x64xbf16>
    %cst = arith.constant 0.000000e+00 : bf16
    %22 = vector.broadcast %cst : bf16 to vector<1x64xbf16>
    %23 = vector.extract_strided_slice %21 {offsets = [0, 0], sizes = [31, 64], strides = [1, 1]} : vector<32x64xbf16> to vector<31x64xbf16>
    %24 = tpu.concatenate %22, %23 in 0 : vector<1x64xbf16>, vector<31x64xbf16> -> vector<32x64xbf16>
    %cst_5 = arith.constant 0.000000e+00 : bf16
    %25 = vector.broadcast %cst_5 : bf16 to vector<32x64xbf16>
    %26 = vector.shape_cast %18 : vector<32x1xi1> to vector<32x1xi1>
    %27 = vector.broadcast %26 : vector<32x1xi1> to vector<32x64xi1>
    %28 = arith.select %27, %24, %25 : vector<32x64xi1>, vector<32x64xbf16>
    %cst_6 = arith.constant 0.000000e+00 : bf16
    %29 = vector.broadcast %cst_6 : bf16 to vector<1x64xbf16>
    %30 = vector.extract_strided_slice %21 {offsets = [1, 0], sizes = [31, 64], strides = [1, 1]} : vector<32x64xbf16> to vector<31x64xbf16>
    %31 = tpu.concatenate %30, %29 in 0 : vector<31x64xbf16>, vector<1x64xbf16> -> vector<32x64xbf16>
    %cst_7 = arith.constant 0.000000e+00 : bf16
    %32 = vector.broadcast %cst_7 : bf16 to vector<32x64xbf16>
    %33 = vector.shape_cast %20 : vector<32x1xi1> to vector<32x1xi1>
    %34 = vector.broadcast %33 : vector<32x1xi1> to vector<32x64xi1>
    %35 = arith.select %34, %31, %32 : vector<32x64xi1>, vector<32x64xbf16>
    %36 = tpu.concatenate %28, %21, %35 in 1 : vector<32x64xbf16>, vector<32x64xbf16>, vector<32x64xbf16> -> vector<32x192xbf16>
    %c0_8 = arith.constant 0 : index
    %c0_9 = arith.constant 0 : index
    %37 = vector.load %arg2[%c0_8, %c0_9] : memref<192x128xbf16, #tpu.memory_space<vmem>>, vector<192x128xbf16>
    %cst_10 = arith.constant dense<0.000000e+00> : vector<32x128xf32>
    %38 = tpu.matmul %36, %37, %cst_10 {dimension_numbers = #tpu.dot_dimension_numbers<[1], [0], [0], [1], [0, 0, 1, 1], [], []>} : vector<32x192xbf16>, vector<192x128xbf16>, vector<32x128xf32> -> vector<32x128xf32>
    %cst_11 = arith.constant dense<0.000000e+00> : vector<128xf32>
    %39 = vector.multi_reduction <add>, %38, %cst_11 [0] : vector<32x128xf32> to vector<128xf32>
    %40 = vector.shape_cast %39 : vector<128xf32> to vector<1x128xf32>
    %41 = arith.mulf %38, %38 : vector<32x128xf32>
    %cst_12 = arith.constant dense<0.000000e+00> : vector<128xf32>
    %42 = vector.multi_reduction <add>, %41, %cst_12 [0] : vector<32x128xf32> to vector<128xf32>
    %43 = vector.shape_cast %42 : vector<128xf32> to vector<1x128xf32>
    %44 = tpu.concatenate %40, %43 in 0 : vector<1x128xf32>, vector<1x128xf32> -> vector<2x128xf32>
    %c8_i32 = arith.constant 8 : i32
    %45 = tpu.dynamic_rotate %44 by %c8_i32 dim 1 : vector<2x128xf32>, i32 -> vector<2x128xf32>
    %46 = arith.addf %44, %45 : vector<2x128xf32>
    %c16_i32_13 = arith.constant 16 : i32
    %47 = tpu.dynamic_rotate %46 by %c16_i32_13 dim 1 : vector<2x128xf32>, i32 -> vector<2x128xf32>
    %48 = arith.addf %46, %47 : vector<2x128xf32>
    %c32_i32 = arith.constant 32 : i32
    %49 = tpu.dynamic_rotate %48 by %c32_i32 dim 1 : vector<2x128xf32>, i32 -> vector<2x128xf32>
    %50 = arith.addf %48, %49 : vector<2x128xf32>
    %c64_i32 = arith.constant 64 : i32
    %51 = tpu.dynamic_rotate %50 by %c64_i32 dim 1 : vector<2x128xf32>, i32 -> vector<2x128xf32>
    %52 = arith.addf %50, %51 : vector<2x128xf32>
    %53 = vector.extract_strided_slice %52 {offsets = [0, 0], sizes = [1, 128], strides = [1, 1]} : vector<2x128xf32> to vector<1x128xf32>
    %cst_14 = arith.constant 0.001953125 : f32
    %54 = vector.broadcast %cst_14 : f32 to vector<1x128xf32>
    %55 = arith.mulf %53, %54 : vector<1x128xf32>
    %56 = vector.extract_strided_slice %52 {offsets = [1, 0], sizes = [1, 128], strides = [1, 1]} : vector<2x128xf32> to vector<1x128xf32>
    %cst_15 = arith.constant 0.001953125 : f32
    %57 = vector.broadcast %cst_15 : f32 to vector<1x128xf32>
    %58 = arith.mulf %56, %57 : vector<1x128xf32>
    %59 = arith.mulf %55, %55 : vector<1x128xf32>
    %60 = arith.subf %58, %59 : vector<1x128xf32>
    %cst_16 = arith.constant 0.000000e+00 : f32
    %61 = vector.broadcast %cst_16 : f32 to vector<1x128xf32>
    %62 = arith.maximumf %60, %61 : vector<1x128xf32>
    %c0_17 = arith.constant 0 : index
    %c0_18 = arith.constant 0 : index
    %63 = vector.load %arg3[%c0_17, %c0_18] : memref<1x128xf32, #tpu.memory_space<vmem>>, vector<1x128xf32>
    %cst_19 = arith.constant 9.99999974E-6 : f32
    %64 = vector.broadcast %cst_19 : f32 to vector<1x128xf32>
    %65 = arith.addf %62, %64 : vector<1x128xf32>
    %66 = math.rsqrt %65 : vector<1x128xf32>
    %67 = arith.mulf %63, %66 : vector<1x128xf32>
    %c0_20 = arith.constant 0 : index
    %c0_21 = arith.constant 0 : index
    %68 = vector.load %arg4[%c0_20, %c0_21] : memref<1x128xf32, #tpu.memory_space<vmem>>, vector<1x128xf32>
    %69 = arith.mulf %55, %67 : vector<1x128xf32>
    %70 = arith.subf %68, %69 : vector<1x128xf32>
    %71 = vector.broadcast %67 : vector<1x128xf32> to vector<32x128xf32>
    %72 = arith.mulf %38, %71 : vector<32x128xf32>
    %73 = vector.broadcast %70 : vector<1x128xf32> to vector<32x128xf32>
    %74 = arith.addf %72, %73 : vector<32x128xf32>
    %cst_22 = arith.constant 0.000000e+00 : f32
    %75 = vector.broadcast %cst_22 : f32 to vector<32x128xf32>
    %76 = arith.maximumf %74, %75 : vector<32x128xf32>
    %77 = arith.truncf %76 : vector<32x128xf32> to vector<32x128xbf16>
    %cst_23 = arith.constant 0.000000e+00 : bf16
    %78 = vector.broadcast %cst_23 : bf16 to vector<1x128xbf16>
    %79 = vector.extract_strided_slice %77 {offsets = [0, 0], sizes = [31, 128], strides = [1, 1]} : vector<32x128xbf16> to vector<31x128xbf16>
    %80 = tpu.concatenate %78, %79 in 0 : vector<1x128xbf16>, vector<31x128xbf16> -> vector<32x128xbf16>
    %cst_24 = arith.constant 0.000000e+00 : bf16
    %81 = vector.broadcast %cst_24 : bf16 to vector<32x128xbf16>
    %82 = vector.shape_cast %18 : vector<32x1xi1> to vector<32x1xi1>
    %83 = vector.broadcast %82 : vector<32x1xi1> to vector<32x128xi1>
    %84 = arith.select %83, %80, %81 : vector<32x128xi1>, vector<32x128xbf16>
    %cst_25 = arith.constant 0.000000e+00 : bf16
    %85 = vector.broadcast %cst_25 : bf16 to vector<1x128xbf16>
    %86 = vector.extract_strided_slice %77 {offsets = [1, 0], sizes = [31, 128], strides = [1, 1]} : vector<32x128xbf16> to vector<31x128xbf16>
    %87 = tpu.concatenate %86, %85 in 0 : vector<31x128xbf16>, vector<1x128xbf16> -> vector<32x128xbf16>
    %cst_26 = arith.constant 0.000000e+00 : bf16
    %88 = vector.broadcast %cst_26 : bf16 to vector<32x128xbf16>
    %89 = vector.shape_cast %20 : vector<32x1xi1> to vector<32x1xi1>
    %90 = vector.broadcast %89 : vector<32x1xi1> to vector<32x128xi1>
    %91 = arith.select %90, %87, %88 : vector<32x128xi1>, vector<32x128xbf16>
    %92 = tpu.concatenate %84, %77, %91 in 1 : vector<32x128xbf16>, vector<32x128xbf16>, vector<32x128xbf16> -> vector<32x384xbf16>
    %c0_27 = arith.constant 0 : index
    %c0_28 = arith.constant 0 : index
    %93 = vector.load %arg5[%c0_27, %c0_28] : memref<384x128xbf16, #tpu.memory_space<vmem>>, vector<384x128xbf16>
    %cst_29 = arith.constant dense<0.000000e+00> : vector<32x128xf32>
    %94 = tpu.matmul %92, %93, %cst_29 {dimension_numbers = #tpu.dot_dimension_numbers<[1], [0], [0], [1], [0, 0, 1, 1], [], []>} : vector<32x384xbf16>, vector<384x128xbf16>, vector<32x128xf32> -> vector<32x128xf32>
    %cst_30 = arith.constant dense<0.000000e+00> : vector<128xf32>
    %95 = vector.multi_reduction <add>, %94, %cst_30 [0] : vector<32x128xf32> to vector<128xf32>
    %96 = vector.shape_cast %95 : vector<128xf32> to vector<1x128xf32>
    %97 = arith.mulf %94, %94 : vector<32x128xf32>
    %cst_31 = arith.constant dense<0.000000e+00> : vector<128xf32>
    %98 = vector.multi_reduction <add>, %97, %cst_31 [0] : vector<32x128xf32> to vector<128xf32>
    %99 = vector.shape_cast %98 : vector<128xf32> to vector<1x128xf32>
    %100 = tpu.concatenate %96, %99 in 0 : vector<1x128xf32>, vector<1x128xf32> -> vector<2x128xf32>
    %c8_i32_32 = arith.constant 8 : i32
    %101 = tpu.dynamic_rotate %100 by %c8_i32_32 dim 1 : vector<2x128xf32>, i32 -> vector<2x128xf32>
    %102 = arith.addf %100, %101 : vector<2x128xf32>
    %c16_i32_33 = arith.constant 16 : i32
    %103 = tpu.dynamic_rotate %102 by %c16_i32_33 dim 1 : vector<2x128xf32>, i32 -> vector<2x128xf32>
    %104 = arith.addf %102, %103 : vector<2x128xf32>
    %c32_i32_34 = arith.constant 32 : i32
    %105 = tpu.dynamic_rotate %104 by %c32_i32_34 dim 1 : vector<2x128xf32>, i32 -> vector<2x128xf32>
    %106 = arith.addf %104, %105 : vector<2x128xf32>
    %c64_i32_35 = arith.constant 64 : i32
    %107 = tpu.dynamic_rotate %106 by %c64_i32_35 dim 1 : vector<2x128xf32>, i32 -> vector<2x128xf32>
    %108 = arith.addf %106, %107 : vector<2x128xf32>
    %109 = vector.extract_strided_slice %108 {offsets = [0, 0], sizes = [1, 128], strides = [1, 1]} : vector<2x128xf32> to vector<1x128xf32>
    %cst_36 = arith.constant 0.001953125 : f32
    %110 = vector.broadcast %cst_36 : f32 to vector<1x128xf32>
    %111 = arith.mulf %109, %110 : vector<1x128xf32>
    %112 = vector.extract_strided_slice %108 {offsets = [1, 0], sizes = [1, 128], strides = [1, 1]} : vector<2x128xf32> to vector<1x128xf32>
    %cst_37 = arith.constant 0.001953125 : f32
    %113 = vector.broadcast %cst_37 : f32 to vector<1x128xf32>
    %114 = arith.mulf %112, %113 : vector<1x128xf32>
    %115 = arith.mulf %111, %111 : vector<1x128xf32>
    %116 = arith.subf %114, %115 : vector<1x128xf32>
    %cst_38 = arith.constant 0.000000e+00 : f32
    %117 = vector.broadcast %cst_38 : f32 to vector<1x128xf32>
    %118 = arith.maximumf %116, %117 : vector<1x128xf32>
    %c0_39 = arith.constant 0 : index
    %c0_40 = arith.constant 0 : index
    %119 = vector.load %arg6[%c0_39, %c0_40] : memref<1x128xf32, #tpu.memory_space<vmem>>, vector<1x128xf32>
    %cst_41 = arith.constant 9.99999974E-6 : f32
    %120 = vector.broadcast %cst_41 : f32 to vector<1x128xf32>
    %121 = arith.addf %118, %120 : vector<1x128xf32>
    %122 = math.rsqrt %121 : vector<1x128xf32>
    %123 = arith.mulf %119, %122 : vector<1x128xf32>
    %c0_42 = arith.constant 0 : index
    %c0_43 = arith.constant 0 : index
    %124 = vector.load %arg7[%c0_42, %c0_43] : memref<1x128xf32, #tpu.memory_space<vmem>>, vector<1x128xf32>
    %125 = arith.mulf %111, %123 : vector<1x128xf32>
    %126 = arith.subf %124, %125 : vector<1x128xf32>
    %127 = vector.broadcast %123 : vector<1x128xf32> to vector<32x128xf32>
    %128 = arith.mulf %94, %127 : vector<32x128xf32>
    %129 = vector.broadcast %126 : vector<1x128xf32> to vector<32x128xf32>
    %130 = arith.addf %128, %129 : vector<32x128xf32>
    %cst_44 = arith.constant 0.000000e+00 : f32
    %131 = vector.broadcast %cst_44 : f32 to vector<32x128xf32>
    %132 = arith.maximumf %130, %131 : vector<32x128xf32>
    %c0_45 = arith.constant 0 : index
    %c0_46 = arith.constant 0 : index
    %133 = vector.load %arg8[%c0_45, %c0_46] : memref<32x128xf32, #tpu.memory_space<vmem>>, vector<32x128xf32>
    tpu.vector_store %arg8[%c0_45, %c0_46], %132 {strides = array<i32>} : memref<32x128xf32, #tpu.memory_space<vmem>>, vector<32x128xf32>,
    return
  }
  func.func @transform_0(%arg0: i32) -> (i32, i32) {
    %c0_i32 = arith.constant 0 : i32
    %c0_i32_0 = arith.constant 0 : i32
    %c0_i32_1 = arith.constant 0 : i32
    return %c0_i32, %c0_i32_0 : i32, i32
  }
  func.func @transform_1(%arg0: i32) -> (i32, i32) {
    %c0_i32 = arith.constant 0 : i32
    %c0_i32_0 = arith.constant 0 : i32
    %c0_i32_1 = arith.constant 0 : i32
    return %c0_i32, %c0_i32_0 : i32, i32
  }
  func.func @transform_2(%arg0: i32) -> (i32, i32) {
    %c0_i32 = arith.constant 0 : i32
    %c0_i32_0 = arith.constant 0 : i32
    %c0_i32_1 = arith.constant 0 : i32
    return %c0_i32, %c0_i32_0 : i32, i32
  }
  func.func @transform_3(%arg0: i32) -> (i32, i32) {
    %c0_i32 = arith.constant 0 : i32
    %c0_i32_0 = arith.constant 0 : i32
    %c0_i32_1 = arith.constant 0 : i32
    return %c0_i32, %c0_i32_0 : i32, i32
  }
  func.func @transform_4(%arg0: i32) -> (i32, i32) {
    %c0_i32 = arith.constant 0 : i32
    %c0_i32_0 = arith.constant 0 : i32
    %c0_i32_1 = arith.constant 0 : i32
    return %c0_i32, %c0_i32_0 : i32, i32
  }
  func.func @transform_5(%arg0: i32) -> (i32, i32) {
    %c0_i32 = arith.constant 0 : i32
    %c0_i32_0 = arith.constant 0 : i32
    %c0_i32_1 = arith.constant 0 : i32
    return %c0_i32, %c0_i32_0 : i32, i32
  }
  func.func @transform_6(%arg0: i32) -> (i32, i32) {
    %c0_i32 = arith.constant 0 : i32
    %c0_i32_0 = arith.constant 0 : i32
    %c0_i32_1 = arith.constant 0 : i32
    return %c0_i32, %c0_i32_0 : i32, i32
  }
  func.func @transform_7(%arg0: i32) -> (i32, i32) {
    %c0_i32 = arith.constant 0 : i32
    %c0_i32_0 = arith.constant 0 : i32
    %c0_i32_1 = arith.constant 0 : i32
    return %c0_i32, %c0_i32_0 : i32, i32
  }
}

</mosaic_0001>

<llo_original>
// kernel: tpu_custom_call.1
$region0: #{tpu_custom_call.1}
  #allocation0 [shape = 'u32[]', space=smem, size = 0x4, offset = 0x4, fixed_abs, tag = 'smem constant byte address 0x4 - core index']
  #allocation1 [shape = 'u32[144,128]{1,0:T(1,128)}', space=vmem, size = 0x12000, scoped, tag = 'internal scratch']
  %s0 = inlined_call_operand.hbm [shape: bf16[32,64], index: 0, kind: input, shape index: {}]
  %s1 = inlined_call_operand.hbm [shape: bf16[192,128], index: 1, kind: input, shape index: {}]
  %s2 = inlined_call_operand.vmem [shape: f32[1,128], index: 2, kind: input, shape index: {}]
  %s3 = inlined_call_operand.vmem [shape: f32[1,128], index: 3, kind: input, shape index: {}]
  %s4 = inlined_call_operand.hbm [shape: bf16[384,128], index: 4, kind: input, shape index: {}]
  %s5 = inlined_call_operand.vmem [shape: f32[1,128], index: 5, kind: input, shape index: {}]
  %s6 = inlined_call_operand.vmem [shape: f32[1,128], index: 6, kind: input, shape index: {}]
  %s7 = inlined_call_operand.hbm [shape: f32[32,128], index: 7, kind: output, shape index: {}]
  %s8 = sld [smem:[#allocation0]]
  $region50: #{tpu_custom_call.1} parent=0
    _
  %s10 = ssub.s32 1, %s8
  %s11 = scalar_select 0, %s10, %s8
  $region1: #{tpu_custom_call.1} parent=0
    #allocation2 [shape = 'u8[8192]{0}', space=vmem, size = 0x2000, scoped, tag = 'input window, operand 0, single buffered']
    #allocation3 [shape = 's32[1]{0}', space=sflag, size = 0x4, scoped, tag = 'scoped memory for tpu_custom_call.1']
    #allocation4 [shape = 's32[1]{0}', space=sflag, size = 0x4, scoped, tag = 'scoped memory for tpu_custom_call.1']
    #allocation5 [shape = 'u8[49152]{0}', space=vmem, size = 0xc000, scoped, tag = 'input window, operand 1, single buffered']
    #allocation6 [shape = 's32[1]{0}', space=sflag, size = 0x4, scoped, tag = 'scoped memory for tpu_custom_call.1']
    #allocation7 [shape = 'u8[98304]{0}', space=vmem, size = 0x18000, scoped, tag = 'input window, operand 4, single buffered']
    #allocation8 [shape = 'u8[16384]{0}', space=vmem, size = 0x4000, scoped, tag = 'output window, operand 0, single buffered']
    %12 = vsyncpa [#allocation3], 0
    %13 = vsyncpa [#allocation6], 0
    %14 = vsyncpa [#allocation4], 0
    // Predicated region
    $region2: #{tpu_custom_call.1} parent=1 // pred_check
      _
    $region3: #{tpu_custom_call.1} parent=1 // pred_check_branch
      %16 = sbr.rel (0) target = $region5
    $region4: #{tpu_custom_call.1} parent=1 // pred_region
      %s18 = ssub.s32 256, 256
      %19 = vsyncadd [#allocation3], %s18
      %s20 = sshll.u32 [#allocation2], 4
      %s21 = int_to_ptr.vmem [resolvable:$true] %s20
      %26 = dma.hbm_to_vmem [thread:$0]  %s0, 256, %s21, [#allocation3], 64, 64, 4
    $region5: #{tpu_custom_call.1} parent=1 // pred_fallthru
      _
    // Predicated region
    $region6: #{tpu_custom_call.1} parent=1 // pred_check
      _
    $region7: #{tpu_custom_call.1} parent=1 // pred_check_branch
      %28 = sbr.rel (0) target = $region9
    $region8: #{tpu_custom_call.1} parent=1 // pred_region
      %s30 = ssub.s32 1536, 1536
      %31 = vsyncadd [#allocation6], %s30
      %s32 = sshll.u32 [#allocation5], 4
      %s33 = int_to_ptr.vmem [resolvable:$true] %s32
      %38 = dma.hbm_to_vmem [thread:$0]  %s1, 1536, %s33, [#allocation6], 64, 64, 4
    $region9: #{tpu_custom_call.1} parent=1 // pred_fallthru
      _
    // Predicated region
    $region10: #{tpu_custom_call.1} parent=1 // pred_check
      _
    $region11: #{tpu_custom_call.1} parent=1 // pred_check_branch
      %40 = sbr.rel (0) target = $region13
    $region12: #{tpu_custom_call.1} parent=1 // pred_region
      _
    $region13: #{tpu_custom_call.1} parent=1 // pred_fallthru
      _
    // Predicated region
    $region14: #{tpu_custom_call.1} parent=1 // pred_check
      _
    $region15: #{tpu_custom_call.1} parent=1 // pred_check_branch
      %42 = sbr.rel (0) target = $region17
    $region16: #{tpu_custom_call.1} parent=1 // pred_region
      _
    $region17: #{tpu_custom_call.1} parent=1 // pred_fallthru
      _
    // Predicated region
    $region18: #{tpu_custom_call.1} parent=1 // pred_check
      _
    $region19: #{tpu_custom_call.1} parent=1 // pred_check_branch
      %44 = sbr.rel (0) target = $region21
    $region20: #{tpu_custom_call.1} parent=1 // pred_region
      %s46 = ssub.s32 3072, 3072
      %47 = vsyncadd [#allocation6], %s46
      %s48 = sshll.u32 [#allocation7], 4
      %s49 = int_to_ptr.vmem [resolvable:$true] %s48
      %54 = dma.hbm_to_vmem [thread:$0]  %s4, 3072, %s49, [#allocation6], 64, 64, 4
    $region21: #{tpu_custom_call.1} parent=1 // pred_fallthru
      _
    // Predicated region
    $region22: #{tpu_custom_call.1} parent=1 // pred_check
      _
    $region23: #{tpu_custom_call.1} parent=1 // pred_check_branch
      %56 = sbr.rel (0) target = $region25
    $region24: #{tpu_custom_call.1} parent=1 // pred_region
      _
    $region25: #{tpu_custom_call.1} parent=1 // pred_fallthru
      _
    // Predicated region
    $region26: #{tpu_custom_call.1} parent=1 // pred_check
      _
    $region27: #{tpu_custom_call.1} parent=1 // pred_check_branch
      %58 = sbr.rel (0) target = $region29
    $region28: #{tpu_custom_call.1} parent=1 // pred_region
      _
    $region29: #{tpu_custom_call.1} parent=1 // pred_fallthru
      _
    // Predicated region
    $region30: #{tpu_custom_call.1} parent=1 // pred_check
      _
    $region31: #{tpu_custom_call.1} parent=1 // pred_check_branch
      %60 = sbr.rel (0) target = $region33
    $region32: #{tpu_custom_call.1} parent=1 // pred_region
      %61 = dma.done [#allocation3], 256
    $region33: #{tpu_custom_call.1} parent=1 // pred_fallthru
      _
    // Predicated region
    $region34: #{tpu_custom_call.1} parent=1 // pred_check
      _
    $region35: #{tpu_custom_call.1} parent=1 // pred_check_branch
      %63 = sbr.rel (0) target = $region37
    $region36: #{tpu_custom_call.1} parent=1 // pred_region
      %64 = dma.done [#allocation6], 1536
    $region37: #{tpu_custom_call.1} parent=1 // pred_fallthru
      _
    // Predicated region
    $region38: #{tpu_custom_call.1} parent=1 // pred_check
      _
    $region39: #{tpu_custom_call.1} parent=1 // pred_check_branch
      %66 = sbr.rel (0) target = $region41
    $region40: #{tpu_custom_call.1} parent=1 // pred_region
      %67 = dma.done [#allocation6], 3072
    $region41: #{tpu_custom_call.1} parent=1 // pred_fallthru
      _
    %v71 = vlaneseq
    %v72 = vshrl.u32 %v71, 7
    %v73 = vadd.s32 %v72, 8
    %v74 = vadd.s32 %v72, 16
    %v75 = vadd.s32 %v72, 24
    %vm76 = vcmp.lt.s32.totalorder %v72, 0
    %v77 = vsub.s32 0, %v72
    %v78 = vsel %vm76, %v77, %v72
    %v79 = vshrl.u32 %v78, 4
    %v80 = vand.u32 %v78, 15
    %v81 = vsub.s32 0, %v80
    %v82 = vsel %vm76, %v81, %v80
    %vm83 = vcmp.lt.s32.totalorder %v73, 0
    %v84 = vsub.s32 0, %v73
    %v85 = vsel %vm83, %v84, %v73
    %v86 = vshrl.u32 %v85, 4
    %v87 = vand.u32 %v85, 15
    %v88 = vsub.s32 0, %v87
    %v89 = vsel %vm83, %v88, %v87
    %vm90 = vcmp.lt.s32.totalorder %v74, 0
    %v91 = vsub.s32 0, %v74
    %v92 = vsel %vm90, %v91, %v74
    %v93 = vshrl.u32 %v92, 4
    %v94 = vand.u32 %v92, 15
    %v95 = vsub.s32 0, %v94
    %v96 = vsel %vm90, %v95, %v94
    %vm97 = vcmp.lt.s32.totalorder %v75, 0
    %v98 = vsub.s32 0, %v75
    %v99 = vsel %vm97, %v98, %v75
    %v100 = vshrl.u32 %v99, 4
    %v101 = vand.u32 %v99, 15
    %v102 = vsub.s32 0, %v101
    %v103 = vsel %vm97, %v102, %v101
    %vm104 = vcmp.ne.s32.totalorder %v82, 0
    %vm105 = vcmp.ne.s32.totalorder %v89, 0
    %vm106 = vcmp.ne.s32.totalorder %v96, 0
    %vm107 = vcmp.ne.s32.totalorder %v103, 0
    %vm108 = vcmp.lt.s32.totalorder %v82, 0
    %vm109 = vcmp.lt.s32.totalorder %v89, 0
    %vm110 = vcmp.lt.s32.totalorder %v96, 0
    %vm111 = vcmp.lt.s32.totalorder %v103, 0
    %vm112 = vmand %vm108, %vm104
    %vm113 = vmand %vm109, %vm105
    %vm114 = vmand %vm110, %vm106
    %vm115 = vmand %vm111, %vm107
    %v116 = vadd.s32 %v82, 16
    %v117 = vadd.s32 %v89, 16
    %v118 = vadd.s32 %v96, 16
    %v119 = vadd.s32 %v103, 16
    %v120 = vsel %vm112, %v116, %v82
    %v121 = vsel %vm113, %v117, %v89
    %v122 = vsel %vm114, %v118, %v96
    %v123 = vsel %vm115, %v119, %v103
    %vm124 = vcmp.ge.s32.totalorder %v120, 1
    %vm125 = vcmp.ge.s32.totalorder %v121, 1
    %vm126 = vcmp.ge.s32.totalorder %v122, 1
    %vm127 = vcmp.ge.s32.totalorder %v123, 1
    %vm128 = vcmp.le.s32.totalorder %v120, 14
    %vm129 = vcmp.le.s32.totalorder %v121, 14
    %vm130 = vcmp.le.s32.totalorder %v122, 14
    %vm131 = vcmp.le.s32.totalorder %v123, 14
    %v132 = vld [vmem:[#allocation2] sm:$0xf]
    %v133 = vld [vmem:[#allocation2 + $0x4] sm:$0xf]
    %v134 = vld [vmem:[#allocation2 + $0x8] sm:$0xf]
    %v135 = vld [vmem:[#allocation2 + $0xc] sm:$0xf]
    %v140 = vunpack.c.l.b16 %v132
    %v141 = vunpack.c.l.b16 %v133
    %v142 = vunpack.c.l.b16 %v134
    %v143 = vunpack.c.l.b16 %v135
    %v144 = vpack.c.b16 %v141, %v140
    %v145 = vpack.c.b16 %v143, %v142
    %vm146 = vsmask.f32 256
    %v148 = vshrl.u32 %v144, 16
    %v150 = vrot.slane %v148, 7
    %v151 = vshll.u32 %v144, 16
    %v153 = vor.u32 %v150, %v151
    %v155 = vshrl.u32 %v145, 16
    %v157 = vrot.slane %v155, 7
    %v158 = vshll.u32 %v145, 16
    %v160 = vor.u32 %v157, %v158
    %v161 = vsel %vm146, %v150, %v160
    %vm164 = vcmask 1040384
    %vm165 = vmand %vm164, %vm146
    %v166 = vsel %vm165, 0, %v153
    %v167 = vsel %vm124, 1, 0
    %v168 = vsel %vm125, 1, 0
    %v169 = vsel %vm126, 1, 0
    %v170 = vsel %vm127, 1, 0
    %vm171 = vcmp.eq.s32.totalorder %v167, 1
    %vm172 = vcmp.eq.s32.totalorder %v168, 1
    %vm173 = vcmp.eq.s32.totalorder %v169, 1
    %vm174 = vcmp.eq.s32.totalorder %v170, 1
    %vm175 = vmpackc.low %vm171, %vm171
    %vm176 = vmpackc.low %vm172, %vm172
    %vm177 = vmpackc.low %vm173, %vm173
    %vm178 = vmpackc.low %vm174, %vm174
    %v179 = vsel %vm175, 65537, 0
    %v180 = vsel %vm176, 65537, 0
    %v181 = vsel %vm177, 65537, 0
    %v182 = vsel %vm178, 65537, 0
    %v183 = vunpack.c.l.b16 %v179
    %v184 = vunpack.c.l.b16 %v180
    %v185 = vunpack.c.l.b16 %v181
    %v186 = vunpack.c.l.b16 %v182
    %v187 = vpack.c.b16 %v184, %v183
    %v188 = vpack.c.b16 %v186, %v185
    %vm189 = vcmp.ne.s16.totalorder %v187, 0
    %vm190 = vcmp.ne.s16.totalorder %v188, 0
    %v191 = vsel %vm189, %v166, 0
    %v192 = vsel %vm190, %v161, 0
    %vm193 = vsmask.f32 7424
    %v194 = vrot.slane %v151, 1
    %v195 = vor.u32 %v148, %v194
    %v196 = vrot.slane %v158, 1
    %v197 = vsel %vm193, %v195, %v196
    %v198 = vor.u32 %v155, %v196
    %vm201 = vcmask 1047552
    %vm202 = vmand %vm201, %vm193
    %v203 = vsel %vm202, %v198, 0
    %v204 = vsel %vm128, 1, 0
    %v205 = vsel %vm129, 1, 0
    %v206 = vsel %vm130, 1, 0
    %v207 = vsel %vm131, 1, 0
    %vm208 = vcmp.eq.s32.totalorder %v204, 1
    %vm209 = vcmp.eq.s32.totalorder %v205, 1
    %vm210 = vcmp.eq.s32.totalorder %v206, 1
    %vm211 = vcmp.eq.s32.totalorder %v207, 1
    %vm212 = vmpackc.low %vm208, %vm208
    %vm213 = vmpackc.low %vm209, %vm209
    %vm214 = vmpackc.low %vm210, %vm210
    %vm215 = vmpackc.low %vm211, %vm211
    %v216 = vsel %vm212, 65537, 0
    %v217 = vsel %vm213, 65537, 0
    %v218 = vsel %vm214, 65537, 0
    %v219 = vsel %vm215, 65537, 0
    %v220 = vunpack.c.l.b16 %v216
    %v221 = vunpack.c.l.b16 %v217
    %v222 = vunpack.c.l.b16 %v218
    %v223 = vunpack.c.l.b16 %v219
    %v224 = vpack.c.b16 %v221, %v220
    %v225 = vpack.c.b16 %v223, %v222
    %vm226 = vcmp.ne.s16.totalorder %v224, 0
    %vm227 = vcmp.ne.s16.totalorder %v225, 0
    %v228 = vsel %vm226, %v197, 0
    %v229 = vsel %vm227, %v203, 0
    %230 = vrot.lane.b32.xlu0 %v144, 64
    %v231 = vpop.permute.xlu0 %230
    %232 = vrot.lane.b32.xlu0 %v145, 64
    %v233 = vpop.permute.xlu0 %232
    %vm234 = vcmask 523264
    %v237 = vsel %vm234, %v191, %v231
    %v241 = vsel %vm234, %v192, %v233
    %v243 = vld [vmem:[#allocation5] sm:$0xf]
    %v244 = vld [vmem:[#allocation5 + $0x4] sm:$0xf]
    %v245 = vld [vmem:[#allocation5 + $0x8] sm:$0xf]
    %v246 = vld [vmem:[#allocation5 + $0xc] sm:$0xf]
    %v247 = vld [vmem:[#allocation5 + $0x10] sm:$0xf]
    %v248 = vld [vmem:[#allocation5 + $0x14] sm:$0xf]
    %v249 = vld [vmem:[#allocation5 + $0x18] sm:$0xf]
    %v250 = vld [vmem:[#allocation5 + $0x1c] sm:$0xf]
    %v251 = vld [vmem:[#allocation5 + $0x20] sm:$0xf]
    %v252 = vld [vmem:[#allocation5 + $0x24] sm:$0xf]
    %v253 = vld [vmem:[#allocation5 + $0x28] sm:$0xf]
    %v254 = vld [vmem:[#allocation5 + $0x2c] sm:$0xf]
    %v255 = vld [vmem:[#allocation5 + $0x30] sm:$0xf]
    %v256 = vld [vmem:[#allocation5 + $0x34] sm:$0xf]
    %v257 = vld [vmem:[#allocation5 + $0x38] sm:$0xf]
    %v258 = vld [vmem:[#allocation5 + $0x3c] sm:$0xf]
    %v259 = vld [vmem:[#allocation5 + $0x40] sm:$0xf]
    %v260 = vld [vmem:[#allocation5 + $0x44] sm:$0xf]
    %v261 = vld [vmem:[#allocation5 + $0x48] sm:$0xf]
    %v262 = vld [vmem:[#allocation5 + $0x4c] sm:$0xf]
    %v263 = vld [vmem:[#allocation5 + $0x50] sm:$0xf]
    %v264 = vld [vmem:[#allocation5 + $0x54] sm:$0xf]
    %v265 = vld [vmem:[#allocation5 + $0x58] sm:$0xf]
    %v266 = vld [vmem:[#allocation5 + $0x5c] sm:$0xf]
    %v291 = vunpack.c.l.b16 %v243
    %v292 = vunpack.c.l.b16 %v244
    %v293 = vunpack.c.l.b16 %v245
    %v294 = vunpack.c.l.b16 %v246
    %v295 = vunpack.c.l.b16 %v247
    %v296 = vunpack.c.l.b16 %v248
    %v297 = vunpack.c.l.b16 %v249
    %v298 = vunpack.c.l.b16 %v250
    %v299 = vunpack.c.l.b16 %v251
    %v300 = vunpack.c.l.b16 %v252
    %v301 = vunpack.c.l.b16 %v253
    %v302 = vunpack.c.l.b16 %v254
    %v303 = vunpack.c.l.b16 %v255
    %v304 = vunpack.c.l.b16 %v256
    %v305 = vunpack.c.l.b16 %v257
    %v306 = vunpack.c.l.b16 %v258
    %v307 = vunpack.c.l.b16 %v259
    %v308 = vunpack.c.l.b16 %v260
    %v309 = vunpack.c.l.b16 %v261
    %v310 = vunpack.c.l.b16 %v262
    %v311 = vunpack.c.l.b16 %v263
    %v312 = vunpack.c.l.b16 %v264
    %v313 = vunpack.c.l.b16 %v265
    %v314 = vunpack.c.l.b16 %v266
    %v315 = vpack.c.b16 %v292, %v291
    %v316 = vpack.c.b16 %v294, %v293
    %v317 = vpack.c.b16 %v296, %v295
    %v318 = vpack.c.b16 %v298, %v297
    %v319 = vpack.c.b16 %v300, %v299
    %v320 = vpack.c.b16 %v302, %v301
    %v321 = vpack.c.b16 %v304, %v303
    %v322 = vpack.c.b16 %v306, %v305
    %v323 = vpack.c.b16 %v308, %v307
    %v324 = vpack.c.b16 %v310, %v309
    %v325 = vpack.c.b16 %v312, %v311
    %v326 = vpack.c.b16 %v314, %v313
    %v340 = vsel %vm234, %v228, 0
    %v343 = vsel %vm234, %v229, 0
    %345 = vmatprep.subr.bf16.mxu0 0
    %346 = vmatpush1.bf16.msra.mxu0 %v322
    %347 = vmatprep.subr.bf16.mxu0 0
    %348 = vmatpush1.bf16.msra.mxu0 %v321
    %349 = vmatprep.subr.bf16.mxu0 0
    %350 = vmatpush1.bf16.msra.mxu0 %v320
    %351 = vmatprep.subr.bf16.mxu0 0
    %352 = vmatpush1.bf16.msra.mxu0 %v319
    %353 = vmatprep.subr.bf16.mxu0 0
    %354 = vmatpush1.bf16.msra.mxu0 %v318
    %355 = vmatprep.subr.bf16.mxu0 0
    %356 = vmatpush1.bf16.msra.mxu0 %v317
    %357 = vmatprep.subr.bf16.mxu0 0
    %358 = vmatpush1.bf16.msra.mxu0 %v316
    %359 = vmatprep.subr.bf16.mxu0 0
    %360 = vmatpush1.bf16.msra.mxu0 %v315
    %361 = vmatprep.subr.bf16.mxu0 0
    %362 = vmatpush2.bf16.msra.mxu0 0
    %363 = vmatprep.subr.bf16.mxu0 0
    %364 = vmatpush2.bf16.msra.mxu0 0
    %365 = vmatprep.subr.bf16.mxu0 0
    %366 = vmatpush2.bf16.msra.mxu0 0
    %367 = vmatprep.subr.bf16.mxu0 0
    %368 = vmatpush2.bf16.msra.mxu0 0
    %369 = vmatprep.subr.bf16.mxu0 0
    %370 = vmatpush2.bf16.msra.mxu0 %v326
    %371 = vmatprep.subr.bf16.mxu0 0
    %372 = vmatpush2.bf16.msra.mxu0 %v325
    %373 = vmatprep.subr.bf16.mxu0 0
    %374 = vmatpush2.bf16.msra.mxu0 %v324
    %375 = vmatprep.subr.bf16.mxu0 0
    %376 = vmatpush2.bf16.msra.mxu0 %v323
    %377 = vmatprep.mubr.bf16.mxu0 %v340
    %378 = vmatmul.mubr.bf16.gmra.mxu0 %v237
    %v379 = vpop.f32.mrf.mxu0
    %v380 = vadd.f32 0.0, %v379
    %v381 = vpop.f32.mrf.mxu0
    %v382 = vpop.f32.mrf.mxu0
    %v383 = vadd.f32 0.0, %v382
    %v384 = vpop.f32.mrf.mxu0
    %385 = vmatprep.mubr.bf16.mxu0 %v343
    %386 = vmatmul.mubr.bf16.gmra.mxu0 %v241
    %v387 = vpop.f32.mrf.mxu0
    %v388 = vadd.f32 0.0, %v387
    %v389 = vpop.f32.mrf.mxu0
    %v390 = vpop.f32.mrf.mxu0
    %v391 = vadd.f32 0.0, %v390
    %v392 = vpop.f32.mrf.mxu0
    %393 = vdwg.mxu0
    %v394 = vadd.f32 %v380, %v383
    %v395 = vadd.f32 %v394, %v388
    %v396 = vadd.f32 %v395, %v391
    %v397 = vrot.slane %v396, 4
    %v398 = vadd.f32 %v396, %v397
    %v399 = vrot.slane %v398, 2
    %v400 = vadd.f32 %v398, %v399
    %v401 = vrot.slane %v400, 1
    %v402 = vadd.f32 %v400, %v401
    %v403 = vmul.f32 %v380, %v380
    %v404 = vmul.f32 %v383, %v383
    %v405 = vmul.f32 %v388, %v388
    %v406 = vmul.f32 %v391, %v391
    %v407 = vadd.f32 %v403, %v404
    %v408 = vadd.f32 %v407, %v405
    %v409 = vadd.f32 %v408, %v406
    %v410 = vrot.slane %v409, 4
    %v411 = vadd.f32 %v409, %v410
    %v412 = vrot.slane %v411, 2
    %v413 = vadd.f32 %v411, %v412
    %v414 = vrot.slane %v413, 1
    %v415 = vadd.f32 %v413, %v414
    %vm416 = vcmask 1040384
    %v417 = vsel %vm416, %v402, %v415
    %418 = vrot.lane.b32.xlu0 %v417, 8
    %v419 = vpop.permute.xlu0 %418
    %v420 = vadd.f32 %v417, %v419
    %421 = vrot.lane.b32.xlu0 %v420, 16
    %v422 = vpop.permute.xlu0 %421
    %v423 = vadd.f32 %v420, %v422
    %424 = vrot.lane.b32.xlu0 %v423, 32
    %v425 = vpop.permute.xlu0 %424
    %v426 = vadd.f32 %v423, %v425
    %427 = vrot.lane.b32.xlu0 %v426, 64
    %v428 = vpop.permute.xlu0 %427
    %v429 = vadd.f32 %v426, %v428
    %v430 = vmul.f32 %v429, 0.001953125
    %v431 = vmul.f32 %v430, %v430
    %v433 = vrot.slane %v431, 7
    %v435 = vsub.f32 %v430, %v433
    %v436 = vmax.f32 %v435, 0.0
    %v437 = vld [vmem:[%s2] sm:$0x1]
    %v438 = vadd.f32 %v436, 1e-05
    %v439 = vrsqrt.pop %v438
    %v442 = vunpack.c.l.s4 1966171168
    %v443 = vunpack.c.0.s8 %v442
    %v444 = vlaneseq
    %v445 = vshrl.u32 %v444, 7
    %v446 = vsub.s32 %v443, %v445
    %v447 = vrot.slane %v439, %v446
    %v448 = vcombine.high %v447, %v447
    %v450 = vunpack.c.l.s4 1966171168
    %v451 = vunpack.c.0.s8 %v450
    %v452 = vlaneseq
    %v453 = vshrl.u32 %v452, 7
    %v454 = vsub.s32 %v451, %v453
    %v455 = vrot.slane %v448, %v454
    %v457 = vmul.f32 %v437, %v455
    %v458 = vld [vmem:[%s3] sm:$0x1]
    %v459 = vmul.f32 %v430, %v457
    %v460 = vsub.f32 %v458, %v459
    %v462 = vlaneseq
    %v463 = vshrl.u32 %v462, 7
    %v464 = vsub.s32 0, %v463
    %v465 = vrot.slane %v457, %v464
    %v467 = vmul.f32 %v380, %v465
    %v468 = vmul.f32 %v383, %v465
    %v469 = vmul.f32 %v388, %v465
    %v470 = vmul.f32 %v391, %v465
    %v472 = vlaneseq
    %v473 = vshrl.u32 %v472, 7
    %v474 = vsub.s32 0, %v473
    %v475 = vrot.slane %v460, %v474
    %v477 = vadd.f32 %v467, %v475
    %v478 = vadd.f32 %v468, %v475
    %v479 = vadd.f32 %v469, %v475
    %v480 = vadd.f32 %v470, %v475
    %v481 = vmax.f32 %v477, 0.0
    %v482 = vmax.f32 %v478, 0.0
    %v483 = vmax.f32 %v479, 0.0
    %v484 = vmax.f32 %v480, 0.0
    %v485 = vpack.c.bf16 %v482, %v481
    %v486 = vpack.c.bf16 %v484, %v483
    %v488 = vshrl.u32 %v485, 16
    %v490 = vrot.slane %v488, 7
    %v491 = vshll.u32 %v485, 16
    %v493 = vor.u32 %v490, %v491
    %v495 = vshrl.u32 %v486, 16
    %v497 = vrot.slane %v495, 7
    %v498 = vshll.u32 %v486, 16
    %v500 = vor.u32 %v497, %v498
    %v501 = vsel %vm146, %v490, %v500
    %v504 = vsel %vm165, 0, %v493
    %v505 = vsel %vm189, %v504, 0
    %v506 = vsel %vm190, %v501, 0
    %v507 = vrot.slane %v491, 1
    %v508 = vor.u32 %v488, %v507
    %v509 = vrot.slane %v498, 1
    %v510 = vsel %vm193, %v508, %v509
    %v511 = vor.u32 %v495, %v509
    %v514 = vsel %vm202, %v511, 0
    %v515 = vsel %vm226, %v510, 0
    %v516 = vsel %vm227, %v514, 0
    %v517 = vld [vmem:[#allocation7] sm:$0xf]
    %v518 = vld [vmem:[#allocation7 + $0x4] sm:$0xf]
    %v519 = vld [vmem:[#allocation7 + $0x8] sm:$0xf]
    %v520 = vld [vmem:[#allocation7 + $0xc] sm:$0xf]
    %v521 = vld [vmem:[#allocation7 + $0x10] sm:$0xf]
    %v522 = vld [vmem:[#allocation7 + $0x14] sm:$0xf]
    %v523 = vld [vmem:[#allocation7 + $0x18] sm:$0xf]
    %v524 = vld [vmem:[#allocation7 + $0x1c] sm:$0xf]
    %v525 = vld [vmem:[#allocation7 + $0x20] sm:$0xf]
    %v526 = vld [vmem:[#allocation7 + $0x24] sm:$0xf]
    %v527 = vld [vmem:[#allocation7 + $0x28] sm:$0xf]
    %v528 = vld [vmem:[#allocation7 + $0x2c] sm:$0xf]
    %v529 = vld [vmem:[#allocation7 + $0x30] sm:$0xf]
    %v530 = vld [vmem:[#allocation7 + $0x34] sm:$0xf]
    %v531 = vld [vmem:[#allocation7 + $0x38] sm:$0xf]
    %v532 = vld [vmem:[#allocation7 + $0x3c] sm:$0xf]
    %v533 = vld [vmem:[#allocation7 + $0x40] sm:$0xf]
    %v534 = vld [vmem:[#allocation7 + $0x44] sm:$0xf]
    %v535 = vld [vmem:[#allocation7 + $0x48] sm:$0xf]
    %v536 = vld [vmem:[#allocation7 + $0x4c] sm:$0xf]
    %v537 = vld [vmem:[#allocation7 + $0x50] sm:$0xf]
    %v538 = vld [vmem:[#allocation7 + $0x54] sm:$0xf]
    %v539 = vld [vmem:[#allocation7 + $0x58] sm:$0xf]
    %v540 = vld [vmem:[#allocation7 + $0x5c] sm:$0xf]
    %v541 = vld [vmem:[#allocation7 + $0x60] sm:$0xf]
    %v542 = vld [vmem:[#allocation7 + $0x64] sm:$0xf]
    %v543 = vld [vmem:[#allocation7 + $0x68] sm:$0xf]
    %v544 = vld [vmem:[#allocation7 + $0x6c] sm:$0xf]
    %v545 = vld [vmem:[#allocation7 + $0x70] sm:$0xf]
    %v546 = vld [vmem:[#allocation7 + $0x74] sm:$0xf]
    %v547 = vld [vmem:[#allocation7 + $0x78] sm:$0xf]
    %v548 = vld [vmem:[#allocation7 + $0x7c] sm:$0xf]
    %v549 = vld [vmem:[#allocation7 + $0x80] sm:$0xf]
    %v550 = vld [vmem:[#allocation7 + $0x84] sm:$0xf]
    %v551 = vld [vmem:[#allocation7 + $0x88] sm:$0xf]
    %v552 = vld [vmem:[#allocation7 + $0x8c] sm:$0xf]
    %v553 = vld [vmem:[#allocation7 + $0x90] sm:$0xf]
    %v554 = vld [vmem:[#allocation7 + $0x94] sm:$0xf]
    %v555 = vld [vmem:[#allocation7 + $0x98] sm:$0xf]
    %v556 = vld [vmem:[#allocation7 + $0x9c] sm:$0xf]
    %v557 = vld [vmem:[#allocation7 + $0xa0] sm:$0xf]
    %v558 = vld [vmem:[#allocation7 + $0xa4] sm:$0xf]
    %v559 = vld [vmem:[#allocation7 + $0xa8] sm:$0xf]
    %v560 = vld [vmem:[#allocation7 + $0xac] sm:$0xf]
    %v561 = vld [vmem:[#allocation7 + $0xb0] sm:$0xf]
    %v562 = vld [vmem:[#allocation7 + $0xb4] sm:$0xf]
    %v563 = vld [vmem:[#allocation7 + $0xb8] sm:$0xf]
    %v564 = vld [vmem:[#allocation7 + $0xbc] sm:$0xf]
    %v613 = vunpack.c.l.b16 %v517
    %v614 = vunpack.c.l.b16 %v518
    %v615 = vunpack.c.l.b16 %v519
    %v616 = vunpack.c.l.b16 %v520
    %v617 = vunpack.c.l.b16 %v521
    %v618 = vunpack.c.l.b16 %v522
    %v619 = vunpack.c.l.b16 %v523
    %v620 = vunpack.c.l.b16 %v524
    %v621 = vunpack.c.l.b16 %v525
    %v622 = vunpack.c.l.b16 %v526
    %v623 = vunpack.c.l.b16 %v527
    %v624 = vunpack.c.l.b16 %v528
    %v625 = vunpack.c.l.b16 %v529
    %v626 = vunpack.c.l.b16 %v530
    %v627 = vunpack.c.l.b16 %v531
    %v628 = vunpack.c.l.b16 %v532
    %v629 = vunpack.c.l.b16 %v533
    %v630 = vunpack.c.l.b16 %v534
    %v631 = vunpack.c.l.b16 %v535
    %v632 = vunpack.c.l.b16 %v536
    %v633 = vunpack.c.l.b16 %v537
    %v634 = vunpack.c.l.b16 %v538
    %v635 = vunpack.c.l.b16 %v539
    %v636 = vunpack.c.l.b16 %v540
    %v637 = vunpack.c.l.b16 %v541
    %v638 = vunpack.c.l.b16 %v542
    %v639 = vunpack.c.l.b16 %v543
    %v640 = vunpack.c.l.b16 %v544
    %v641 = vunpack.c.l.b16 %v545
    %v642 = vunpack.c.l.b16 %v546
    %v643 = vunpack.c.l.b16 %v547
    %v644 = vunpack.c.l.b16 %v548
    %v645 = vunpack.c.l.b16 %v549
    %v646 = vunpack.c.l.b16 %v550
    %v647 = vunpack.c.l.b16 %v551
    %v648 = vunpack.c.l.b16 %v552
    %v649 = vunpack.c.l.b16 %v553
    %v650 = vunpack.c.l.b16 %v554
    %v651 = vunpack.c.l.b16 %v555
    %v652 = vunpack.c.l.b16 %v556
    %v653 = vunpack.c.l.b16 %v557
    %v654 = vunpack.c.l.b16 %v558
    %v655 = vunpack.c.l.b16 %v559
    %v656 = vunpack.c.l.b16 %v560
    %v657 = vunpack.c.l.b16 %v561
    %v658 = vunpack.c.l.b16 %v562
    %v659 = vunpack.c.l.b16 %v563
    %v660 = vunpack.c.l.b16 %v564
    %v661 = vpack.c.b16 %v614, %v613
    %v662 = vpack.c.b16 %v616, %v615
    %v663 = vpack.c.b16 %v618, %v617
    %v664 = vpack.c.b16 %v620, %v619
    %v665 = vpack.c.b16 %v622, %v621
    %v666 = vpack.c.b16 %v624, %v623
    %v667 = vpack.c.b16 %v626, %v625
    %v668 = vpack.c.b16 %v628, %v627
    %v669 = vpack.c.b16 %v630, %v629
    %v670 = vpack.c.b16 %v632, %v631
    %v671 = vpack.c.b16 %v634, %v633
    %v672 = vpack.c.b16 %v636, %v635
    %v673 = vpack.c.b16 %v638, %v637
    %v674 = vpack.c.b16 %v640, %v639
    %v675 = vpack.c.b16 %v642, %v641
    %v676 = vpack.c.b16 %v644, %v643
    %v677 = vpack.c.b16 %v646, %v645
    %v678 = vpack.c.b16 %v648, %v647
    %v679 = vpack.c.b16 %v650, %v649
    %v680 = vpack.c.b16 %v652, %v651
    %v681 = vpack.c.b16 %v654, %v653
    %v682 = vpack.c.b16 %v656, %v655
    %v683 = vpack.c.b16 %v658, %v657
    %v684 = vpack.c.b16 %v660, %v659
    %709 = vmatprep.subr.bf16.mxu0 0
    %710 = vmatpush1.bf16.msra.mxu0 %v668
    %711 = vmatprep.subr.bf16.mxu0 0
    %712 = vmatpush1.bf16.msra.mxu0 %v667
    %713 = vmatprep.subr.bf16.mxu0 0
    %714 = vmatpush1.bf16.msra.mxu0 %v666
    %715 = vmatprep.subr.bf16.mxu0 0
    %716 = vmatpush1.bf16.msra.mxu0 %v665
    %717 = vmatprep.subr.bf16.mxu0 0
    %718 = vmatpush1.bf16.msra.mxu0 %v664
    %719 = vmatprep.subr.bf16.mxu0 0
    %720 = vmatpush1.bf16.msra.mxu0 %v663
    %721 = vmatprep.subr.bf16.mxu0 0
    %722 = vmatpush1.bf16.msra.mxu0 %v662
    %723 = vmatprep.subr.bf16.mxu0 0
    %724 = vmatpush1.bf16.msra.mxu0 %v661
    %725 = vmatprep.subr.bf16.mxu0 0
    %726 = vmatpush2.bf16.msra.mxu0 %v676
    %727 = vmatprep.subr.bf16.mxu0 0
    %728 = vmatpush2.bf16.msra.mxu0 %v675
    %729 = vmatprep.subr.bf16.mxu0 0
    %730 = vmatpush2.bf16.msra.mxu0 %v674
    %731 = vmatprep.subr.bf16.mxu0 0
    %732 = vmatpush2.bf16.msra.mxu0 %v673
    %733 = vmatprep.subr.bf16.mxu0 0
    %734 = vmatpush2.bf16.msra.mxu0 %v672
    %735 = vmatprep.subr.bf16.mxu0 0
    %736 = vmatpush2.bf16.msra.mxu0 %v671
    %737 = vmatprep.subr.bf16.mxu0 0
    %738 = vmatpush2.bf16.msra.mxu0 %v670
    %739 = vmatprep.subr.bf16.mxu0 0
    %740 = vmatpush2.bf16.msra.mxu0 %v669
    %741 = vmatprep.mubr.bf16.mxu0 %v485
    %742 = vmatmul.mubr.bf16.gmra.mxu0 %v505
    %v743 = vpop.f32.mrf.mxu0
    %v744 = vadd.f32 0.0, %v743
    %v745 = vpop.f32.mrf.mxu0
    %v746 = vpop.f32.mrf.mxu0
    %v747 = vadd.f32 0.0, %v746
    %v748 = vpop.f32.mrf.mxu0
    %749 = vmatprep.mubr.bf16.mxu0 %v486
    %750 = vmatmul.mubr.bf16.gmra.mxu0 %v506
    %v751 = vpop.f32.mrf.mxu0
    %v752 = vadd.f32 0.0, %v751
    %v753 = vpop.f32.mrf.mxu0
    %v754 = vpop.f32.mrf.mxu0
    %v755 = vadd.f32 0.0, %v754
    %v756 = vpop.f32.mrf.mxu0
    %757 = vdwg.mxu0
    %758 = vmatprep.subr.bf16.mxu0 0
    %759 = vmatpush1.bf16.msra.mxu0 %v684
    %760 = vmatprep.subr.bf16.mxu0 0
    %761 = vmatpush1.bf16.msra.mxu0 %v683
    %762 = vmatprep.subr.bf16.mxu0 0
    %763 = vmatpush1.bf16.msra.mxu0 %v682
    %764 = vmatprep.subr.bf16.mxu0 0
    %765 = vmatpush1.bf16.msra.mxu0 %v681
    %766 = vmatprep.subr.bf16.mxu0 0
    %767 = vmatpush1.bf16.msra.mxu0 %v680
    %768 = vmatprep.subr.bf16.mxu0 0
    %769 = vmatpush1.bf16.msra.mxu0 %v679
    %770 = vmatprep.subr.bf16.mxu0 0
    %771 = vmatpush1.bf16.msra.mxu0 %v678
    %772 = vmatprep.subr.bf16.mxu0 0
    %773 = vmatpush1.bf16.msra.mxu0 %v677
    %774 = vmatprep.subr.bf16.mxu0 0
    %775 = vmatpush2.bf16.msra.mxu0 0
    %776 = vmatprep.subr.bf16.mxu0 0
    %777 = vmatpush2.bf16.msra.mxu0 0
    %778 = vmatprep.subr.bf16.mxu0 0
    %779 = vmatpush2.bf16.msra.mxu0 0
    %780 = vmatprep.subr.bf16.mxu0 0
    %781 = vmatpush2.bf16.msra.mxu0 0
    %782 = vmatprep.subr.bf16.mxu0 0
    %783 = vmatpush2.bf16.msra.mxu0 0
    %784 = vmatprep.subr.bf16.mxu0 0
    %785 = vmatpush2.bf16.msra.mxu0 0
    %786 = vmatprep.subr.bf16.mxu0 0
    %787 = vmatpush2.bf16.msra.mxu0 0
    %788 = vmatprep.subr.bf16.mxu0 0
    %789 = vmatpush2.bf16.msra.mxu0 0
    %790 = vmatprep.mubr.bf16.mxu0 0
    %791 = vmatmul.mubr.bf16.gmra.mxu0 %v515
    %v792 = vpop.f32.mrf.mxu0
    %v793 = vadd.f32 %v744, %v792
    %v794 = vpop.f32.mrf.mxu0
    %v795 = vpop.f32.mrf.mxu0
    %v796 = vadd.f32 %v747, %v795
    %v797 = vpop.f32.mrf.mxu0
    %798 = vmatprep.mubr.bf16.mxu0 0
    %799 = vmatmul.mubr.bf16.gmra.mxu0 %v516
    %v800 = vpop.f32.mrf.mxu0
    %v801 = vadd.f32 %v752, %v800
    %v802 = vpop.f32.mrf.mxu0
    %v803 = vpop.f32.mrf.mxu0
    %v804 = vadd.f32 %v755, %v803
    %v805 = vpop.f32.mrf.mxu0
    %806 = vdwg.mxu0
    %v807 = vadd.f32 %v793, %v796
    %v808 = vadd.f32 %v807, %v801
    %v809 = vadd.f32 %v808, %v804
    %v810 = vrot.slane %v809, 4
    %v811 = vadd.f32 %v809, %v810
    %v812 = vrot.slane %v811, 2
    %v813 = vadd.f32 %v811, %v812
    %v814 = vrot.slane %v813, 1
    %v815 = vadd.f32 %v813, %v814
    %v816 = vmul.f32 %v793, %v793
    %v817 = vmul.f32 %v796, %v796
    %v818 = vmul.f32 %v801, %v801
    %v819 = vmul.f32 %v804, %v804
    %v820 = vadd.f32 %v816, %v817
    %v821 = vadd.f32 %v820, %v818
    %v822 = vadd.f32 %v821, %v819
    %v823 = vrot.slane %v822, 4
    %v824 = vadd.f32 %v822, %v823
    %v825 = vrot.slane %v824, 2
    %v826 = vadd.f32 %v824, %v825
    %v827 = vrot.slane %v826, 1
    %v828 = vadd.f32 %v826, %v827
    %v829 = vsel %vm416, %v815, %v828
    %830 = vrot.lane.b32.xlu0 %v829, 8
    %v831 = vpop.permute.xlu0 %830
    %v832 = vadd.f32 %v829, %v831
    %833 = vrot.lane.b32.xlu0 %v832, 16
    %v834 = vpop.permute.xlu0 %833
    %v835 = vadd.f32 %v832, %v834
    %836 = vrot.lane.b32.xlu0 %v835, 32
    %v837 = vpop.permute.xlu0 %836
    %v838 = vadd.f32 %v835, %v837
    %839 = vrot.lane.b32.xlu0 %v838, 64
    %v840 = vpop.permute.xlu0 %839
    %v841 = vadd.f32 %v838, %v840
    %v842 = vmul.f32 %v841, 0.001953125
    %v843 = vmul.f32 %v842, %v842
    %v845 = vrot.slane %v843, 7
    %v847 = vsub.f32 %v842, %v845
    %v848 = vmax.f32 %v847, 0.0
    %v849 = vld [vmem:[%s5] sm:$0x1]
    %v850 = vadd.f32 %v848, 1e-05
    %v851 = vrsqrt.pop %v850
    %v854 = vunpack.c.l.s4 1966171168
    %v855 = vunpack.c.0.s8 %v854
    %v856 = vlaneseq
    %v857 = vshrl.u32 %v856, 7
    %v858 = vsub.s32 %v855, %v857
    %v859 = vrot.slane %v851, %v858
    %v860 = vcombine.high %v859, %v859
    %v862 = vunpack.c.l.s4 1966171168
    %v863 = vunpack.c.0.s8 %v862
    %v864 = vlaneseq
    %v865 = vshrl.u32 %v864, 7
    %v866 = vsub.s32 %v863, %v865
    %v867 = vrot.slane %v860, %v866
    %v869 = vmul.f32 %v849, %v867
    %v870 = vld [vmem:[%s6] sm:$0x1]
    %v871 = vmul.f32 %v842, %v869
    %v872 = vsub.f32 %v870, %v871
    %v874 = vlaneseq
    %v875 = vshrl.u32 %v874, 7
    %v876 = vsub.s32 0, %v875
    %v877 = vrot.slane %v869, %v876
    %v879 = vmul.f32 %v793, %v877
    %v880 = vmul.f32 %v796, %v877
    %v881 = vmul.f32 %v801, %v877
    %v882 = vmul.f32 %v804, %v877
    %v884 = vlaneseq
    %v885 = vshrl.u32 %v884, 7
    %v886 = vsub.s32 0, %v885
    %v887 = vrot.slane %v872, %v886
    %v889 = vadd.f32 %v879, %v887
    %v890 = vadd.f32 %v880, %v887
    %v891 = vadd.f32 %v881, %v887
    %v892 = vadd.f32 %v882, %v887
    %v893 = vmax.f32 %v889, 0.0
    %v894 = vmax.f32 %v890, 0.0
    %v895 = vmax.f32 %v891, 0.0
    %v896 = vmax.f32 %v892, 0.0
    %897 = vst [vmem:[#allocation8] sm:$0xff] %v893
    %898 = vst [vmem:[#allocation8 + $0x8] sm:$0xff] %v894
    %899 = vst [vmem:[#allocation8 + $0x10] sm:$0xff] %v895
    %900 = vst [vmem:[#allocation8 + $0x18] sm:$0xff] %v896
    // Predicated region
    $region42: #{tpu_custom_call.1} parent=1 // pred_check
      _
    $region43: #{tpu_custom_call.1} parent=1 // pred_check_branch
      %902 = sbr.rel (0) target = $region45
    $region44: #{tpu_custom_call.1} parent=1 // pred_region
      %s904 = ssub.s32 512, 512
      %905 = vsyncadd [#allocation4], %s904
      %s906 = sshll.u32 [#allocation8], 4
      %s907 = int_to_ptr.vmem [resolvable:$true] %s906
      %912 = dma.vmem_to_hbm [thread:$0]  %s907, 512, %s7, [#allocation4], 128, 128, 8
    $region45: #{tpu_custom_call.1} parent=1 // pred_fallthru
      _
    // Predicated region
    $region46: #{tpu_custom_call.1} parent=1 // pred_check
      _
    $region47: #{tpu_custom_call.1} parent=1 // pred_check_branch
      %914 = sbr.rel (0) target = $region49
    $region48: #{tpu_custom_call.1} parent=1 // pred_region
      %915 = dma.done [#allocation4], 512
    $region49: #{tpu_custom_call.1} parent=1 // pred_fallthru
      _
    %916 = vsyncpa [#allocation3], 1
    %917 = vsyncpa [#allocation6], 1
    %918 = vsyncpa [#allocation4], 1

</llo_original>
